<compile_context>
chip_gen: v6e
topology: v6e:2x2x1
jax: 0.10.0
libtpu: 0.0.40
codegen_flags: <defaults>
</compile_context>

<pallas_src>
import jax
import jax.numpy as jnp
from jax.experimental import pallas as pl
from jax.experimental.pallas import tpu as pltpu


def _round_up(v, m):
    return (v + m - 1) // m * m


# ---------------------------------------------------------------------------
# Pallas kernel: single invocation, all layers unrolled, all operands resident
# ---------------------------------------------------------------------------
def _contextualize_kernel(x_ref, mixbd_ref, w_ref, b_ref, o_ref):
    # x_ref    : (M, Hp)     bf16  flattened embeddings, M = B*S
    # mixbd_ref: (L, M, M)   bf16  block-diag sequence mix, kron(I_B, mix[l])
    # w_ref    : (L, Hp, Dp) bf16  per-layer feature projection
    # b_ref    : (L, 1, Dp)  f32   per-layer bias
    # o_ref    : (L, M, Dp)  f32   output (last dim lane-dense -> unmasked vst)
    x = x_ref[...]                       # loaded once, reused by every layer
    num_layers = w_ref.shape[0]
    for l in range(num_layers):          # L is small and static -> unrolled
        # Sequence mix first (same op order as the f32 reference): one GEMM
        # covering all sentences, f32 MXU accumulation.
        mixed = jnp.dot(mixbd_ref[l], x,
                        preferred_element_type=jnp.float32)           # (M, Hp)
        proj = jnp.dot(mixed.astype(jnp.bfloat16), w_ref[l],
                       preferred_element_type=jnp.float32)            # (M, Dp)
        o_ref[l] = jnp.tanh(proj + b_ref[l])   # one full-block store per layer


def contextualize(x_flat, mix_bd, w, b):
    """x_flat: (M, Hp) bf16; mix_bd: (L, M, M) bf16; w: (L, Hp, Dp) bf16;
    b: (L, 1, Dp) f32  ->  (L, M, Dp) f32."""
    L, _, Dp = w.shape
    M = x_flat.shape[0]
    vmem = pl.BlockSpec(memory_space=pltpu.MemorySpace.VMEM)
    return pl.pallas_call(
        _contextualize_kernel,
        out_shape=jax.ShapeDtypeStruct((L, M, Dp), jnp.float32),
        in_specs=[vmem, vmem, vmem, vmem],
        out_specs=vmem,
    )(x_flat, mix_bd, w, b)


@jax.jit
def _forward_impl(ids, emb_k, mix_k, w_k, b_k):
    """ids: (B, S) int32 -> (L, B, S, Dp) f32 (repr dim still lane-padded)."""
    B, S = ids.shape
    L = mix_k.shape[0]
    x_flat = emb_k[ids.reshape(-1)]                        # (B*S, Hp) bf16 gather
    # Per-sentence sequence mix expressed as one GEMM per layer: block-diagonal
    # kron(I_B, mix[l]) acting on the flattened (B*S, Hp) embeddings. Tiny
    # (few KB) and fused into the same jit as the kernel.
    eye = jnp.eye(B, dtype=mix_k.dtype)
    mix_bd = (eye[None, :, None, :, None] * mix_k[:, None, :, None, :]
              ).reshape(L, B * S, B * S)
    out = contextualize(x_flat, mix_bd, w_k, b_k)          # (L, B*S, Dp)
    return out.reshape(L, B, S, -1)                        # (L, B, S, Dp)


# ---------------------------------------------------------------------------
# Glue: tokenization + embedding + wrapper matching the module's contract
# ---------------------------------------------------------------------------
class PallasContextualizer:
    def __init__(self, vocab, num_layers=3, seq_len=8, hidden=32, repr_dim=32):
        self.vocab = {w: i + 1 for i, w in enumerate(vocab)}   # 0 = PAD
        self.num_layers = num_layers
        self.seq_len = seq_len
        self.hidden = hidden
        self.repr_dim = repr_dim

        key = jax.random.PRNGKey(0)
        k_emb, k_mix, k_w, k_b = jax.random.split(key, 4)
        vocab_size = len(self.vocab) + 1

        # f32 parameters (used by the pure-JAX reference).
        emb = jax.random.normal(
            k_emb, (vocab_size, hidden), dtype=jnp.float32) * 0.1
        self.embedding = emb.at[0].set(0.0)                    # PAD row all zeros
        self.mix = jax.random.normal(
            k_mix, (num_layers, seq_len, seq_len), dtype=jnp.float32) * (1.0 / seq_len)
        self.w = jax.random.normal(
            k_w, (num_layers, hidden, repr_dim), dtype=jnp.float32) * (1.0 / hidden ** 0.5)
        self.b = jax.random.normal(
            k_b, (num_layers, 1, repr_dim), dtype=jnp.float32) * 0.01

        # Kernel-side parameters: lane-padded (128) and cast to bf16 ONCE here
        # (call-invariant), so forward() does no per-call pad/cast work. Zero
        # padding keeps the math exact; padded output columns are tanh(0)=0
        # and get sliced off in forward().
        Hp = _round_up(hidden, 128)
        Dp = _round_up(repr_dim, 128)
        self._Hp, self._Dp = Hp, Dp
        self.emb_k = jnp.zeros((vocab_size, Hp), jnp.bfloat16).at[:, :hidden].set(
            self.embedding.astype(jnp.bfloat16))
        self.mix_k = self.mix.astype(jnp.bfloat16)
        self.w_k = jnp.zeros((num_layers, Hp, Dp), jnp.bfloat16).at[:, :hidden, :repr_dim].set(
            self.w.astype(jnp.bfloat16))
        self.b_k = jnp.zeros((num_layers, 1, Dp), jnp.float32).at[:, :, :repr_dim].set(
            self.b)

    def _tokenize(self, sentences):
        # TODO(synk): string tokenization / vocab lookup has no Pallas equivalent; stays on host.
        rows = []
        for sent in sentences:
            row = [self.vocab.get(w, 0) for w in sent[: self.seq_len]]
            row += [0] * (self.seq_len - len(row))
            rows.append(row)
        return jnp.asarray(rows, dtype=jnp.int32)

    def forward(self, sentences):
        """sentences: List[List[str]] -> List of (num_layers, seq_len_i, repr_dim)."""
        ids = self._tokenize(sentences)                                   # (B, S)
        out = _forward_impl(ids, self.emb_k, self.mix_k, self.w_k, self.b_k)
        # Per-sentence slicing (ragged List output) is inherent to the contract.
        return [out[:, i, : len(sent), : self.repr_dim]
                for i, sent in enumerate(sentences)]

    # pure-JAX f32 reference for validation
    def reference(self, sentences):
        ids = self._tokenize(sentences)
        x = self.embedding[ids]                                   # (B, S, H) f32
        mixed = jnp.einsum('lst,bth->blsh', self.mix, x)
        proj = jnp.einsum('blsh,lhd->blsd', mixed, self.w)
        out = jnp.tanh(proj + self.b[None, :, :, :])
        return [out[i, :, : len(sent), :] for i, sent in enumerate(sentences)]


if __name__ == "__main__":
    words = ["the", "quick", "brown", "fox", "jumps", "over", "lazy", "dog",
             "a", "cat", "sat", "on", "mat"]
    ctx = PallasContextualizer(words, num_layers=3, seq_len=8, hidden=32, repr_dim=32)

    sentences = [
        ["the", "quick", "brown", "fox", "jumps", "over", "the", "dog"],
        ["a", "cat", "sat", "on", "the", "mat"],
    ]

    reps = ctx.forward(sentences)
    reps = [jax.block_until_ready(r) for r in reps]
    refs = ctx.reference(sentences)

    for r, ref, sent in zip(reps, refs, sentences):
        assert r.shape == (3, len(sent), 32), r.shape
        # bf16 operands with f32 MXU accumulation: tolerance ~1e-3, assert at 1e-2.
        assert jnp.allclose(r, ref, atol=1e-2, rtol=1e-2)

    print("KERNEL_OK")
</pallas_src>

<mosaic_0001>
module attributes {stable_mosaic.version = 11 : i64} {
  func.func @_contextualize_kernel(%arg0: memref<16x128xbf16, #tpu.memory_space<vmem>>, %arg1: memref<3x16x16xbf16, #tpu.memory_space<vmem>>, %arg2: memref<3x128x128xbf16, #tpu.memory_space<vmem>>, %arg3: memref<3x1x128xf32, #tpu.memory_space<vmem>>, %arg4: memref<3x16x128xf32, #tpu.memory_space<vmem>>) attributes {dimension_semantics = [], scalar_prefetch = 0 : i64, scratch_operands = 0 : i64, tpu.core_type = #tpu.core_type<tc>} {
    %c0 = arith.constant 0 : index
    %c0_0 = arith.constant 0 : index
    %0 = vector.load %arg0[%c0, %c0_0] : memref<16x128xbf16, #tpu.memory_space<vmem>>, vector<16x128xbf16>
    %c0_1 = arith.constant 0 : index
    %c0_2 = arith.constant 0 : index
    %c0_3 = arith.constant 0 : index
    %1 = vector.load %arg1[%c0_1, %c0_2, %c0_3] : memref<3x16x16xbf16, #tpu.memory_space<vmem>>, vector<1x16x16xbf16>
    %2 = vector.shape_cast %1 : vector<1x16x16xbf16> to vector<16x16xbf16>
    %cst = arith.constant dense<0.000000e+00> : vector<16x128xf32>
    %3 = tpu.matmul %2, %0, %cst {dimension_numbers = #tpu.dot_dimension_numbers<[1], [0], [0], [1], [0, 0, 1, 1], [], []>} : vector<16x16xbf16>, vector<16x128xbf16>, vector<16x128xf32> -> vector<16x128xf32>
    %4 = arith.truncf %3 : vector<16x128xf32> to vector<16x128xbf16>
    %c0_4 = arith.constant 0 : index
    %c0_5 = arith.constant 0 : index
    %c0_6 = arith.constant 0 : index
    %5 = vector.load %arg2[%c0_4, %c0_5, %c0_6] : memref<3x128x128xbf16, #tpu.memory_space<vmem>>, vector<1x128x128xbf16>
    %6 = vector.shape_cast %5 : vector<1x128x128xbf16> to vector<128x128xbf16>
    %cst_7 = arith.constant dense<0.000000e+00> : vector<16x128xf32>
    %7 = tpu.matmul %4, %6, %cst_7 {dimension_numbers = #tpu.dot_dimension_numbers<[1], [0], [0], [1], [0, 0, 1, 1], [], []>} : vector<16x128xbf16>, vector<128x128xbf16>, vector<16x128xf32> -> vector<16x128xf32>
    %c0_8 = arith.constant 0 : index
    %c0_9 = arith.constant 0 : index
    %c0_10 = arith.constant 0 : index
    %8 = vector.load %arg3[%c0_8, %c0_9, %c0_10] : memref<3x1x128xf32, #tpu.memory_space<vmem>>, vector<1x1x128xf32>
    %9 = vector.shape_cast %8 : vector<1x1x128xf32> to vector<1x128xf32>
    %10 = vector.broadcast %9 : vector<1x128xf32> to vector<16x128xf32>
    %11 = arith.addf %7, %10 : vector<16x128xf32>
    %12 = math.tanh %11 : vector<16x128xf32>
    %c0_11 = arith.constant 0 : index
    %c0_12 = arith.constant 0 : index
    %c0_13 = arith.constant 0 : index
    %13 = vector.load %arg4[%c0_11, %c0_12, %c0_13] : memref<3x16x128xf32, #tpu.memory_space<vmem>>, vector<1x16x128xf32>
    %14 = vector.shape_cast %13 : vector<1x16x128xf32> to vector<16x128xf32>
    %15 = vector.shape_cast %12 : vector<16x128xf32> to vector<1x16x128xf32>
    tpu.vector_store %arg4[%c0_11, %c0_12, %c0_13], %15 {strides = array<i32>} : memref<3x16x128xf32, #tpu.memory_space<vmem>>, vector<1x16x128xf32>,
    %c1 = arith.constant 1 : index
    %c0_14 = arith.constant 0 : index
    %c0_15 = arith.constant 0 : index
    %16 = vector.load %arg1[%c1, %c0_14, %c0_15] : memref<3x16x16xbf16, #tpu.memory_space<vmem>>, vector<1x16x16xbf16>
    %17 = vector.shape_cast %16 : vector<1x16x16xbf16> to vector<16x16xbf16>
    %cst_16 = arith.constant dense<0.000000e+00> : vector<16x128xf32>
    %18 = tpu.matmul %17, %0, %cst_16 {dimension_numbers = #tpu.dot_dimension_numbers<[1], [0], [0], [1], [0, 0, 1, 1], [], []>} : vector<16x16xbf16>, vector<16x128xbf16>, vector<16x128xf32> -> vector<16x128xf32>
    %19 = arith.truncf %18 : vector<16x128xf32> to vector<16x128xbf16>
    %c1_17 = arith.constant 1 : index
    %c0_18 = arith.constant 0 : index
    %c0_19 = arith.constant 0 : index
    %20 = vector.load %arg2[%c1_17, %c0_18, %c0_19] : memref<3x128x128xbf16, #tpu.memory_space<vmem>>, vector<1x128x128xbf16>
    %21 = vector.shape_cast %20 : vector<1x128x128xbf16> to vector<128x128xbf16>
    %cst_20 = arith.constant dense<0.000000e+00> : vector<16x128xf32>
    %22 = tpu.matmul %19, %21, %cst_20 {dimension_numbers = #tpu.dot_dimension_numbers<[1], [0], [0], [1], [0, 0, 1, 1], [], []>} : vector<16x128xbf16>, vector<128x128xbf16>, vector<16x128xf32> -> vector<16x128xf32>
    %c1_21 = arith.constant 1 : index
    %c0_22 = arith.constant 0 : index
    %c0_23 = arith.constant 0 : index
    %23 = vector.load %arg3[%c1_21, %c0_22, %c0_23] : memref<3x1x128xf32, #tpu.memory_space<vmem>>, vector<1x1x128xf32>
    %24 = vector.shape_cast %23 : vector<1x1x128xf32> to vector<1x128xf32>
    %25 = vector.broadcast %24 : vector<1x128xf32> to vector<16x128xf32>
    %26 = arith.addf %22, %25 : vector<16x128xf32>
    %27 = math.tanh %26 : vector<16x128xf32>
    %c1_24 = arith.constant 1 : index
    %c0_25 = arith.constant 0 : index
    %c0_26 = arith.constant 0 : index
    %28 = vector.load %arg4[%c1_24, %c0_25, %c0_26] : memref<3x16x128xf32, #tpu.memory_space<vmem>>, vector<1x16x128xf32>
    %29 = vector.shape_cast %28 : vector<1x16x128xf32> to vector<16x128xf32>
    %30 = vector.shape_cast %27 : vector<16x128xf32> to vector<1x16x128xf32>
    tpu.vector_store %arg4[%c1_24, %c0_25, %c0_26], %30 {strides = array<i32>} : memref<3x16x128xf32, #tpu.memory_space<vmem>>, vector<1x16x128xf32>,
    %c2 = arith.constant 2 : index
    %c0_27 = arith.constant 0 : index
    %c0_28 = arith.constant 0 : index
    %31 = vector.load %arg1[%c2, %c0_27, %c0_28] : memref<3x16x16xbf16, #tpu.memory_space<vmem>>, vector<1x16x16xbf16>
    %32 = vector.shape_cast %31 : vector<1x16x16xbf16> to vector<16x16xbf16>
    %cst_29 = arith.constant dense<0.000000e+00> : vector<16x128xf32>
    %33 = tpu.matmul %32, %0, %cst_29 {dimension_numbers = #tpu.dot_dimension_numbers<[1], [0], [0], [1], [0, 0, 1, 1], [], []>} : vector<16x16xbf16>, vector<16x128xbf16>, vector<16x128xf32> -> vector<16x128xf32>
    %34 = arith.truncf %33 : vector<16x128xf32> to vector<16x128xbf16>
    %c2_30 = arith.constant 2 : index
    %c0_31 = arith.constant 0 : index
    %c0_32 = arith.constant 0 : index
    %35 = vector.load %arg2[%c2_30, %c0_31, %c0_32] : memref<3x128x128xbf16, #tpu.memory_space<vmem>>, vector<1x128x128xbf16>
    %36 = vector.shape_cast %35 : vector<1x128x128xbf16> to vector<128x128xbf16>
    %cst_33 = arith.constant dense<0.000000e+00> : vector<16x128xf32>
    %37 = tpu.matmul %34, %36, %cst_33 {dimension_numbers = #tpu.dot_dimension_numbers<[1], [0], [0], [1], [0, 0, 1, 1], [], []>} : vector<16x128xbf16>, vector<128x128xbf16>, vector<16x128xf32> -> vector<16x128xf32>
    %c2_34 = arith.constant 2 : index
    %c0_35 = arith.constant 0 : index
    %c0_36 = arith.constant 0 : index
    %38 = vector.load %arg3[%c2_34, %c0_35, %c0_36] : memref<3x1x128xf32, #tpu.memory_space<vmem>>, vector<1x1x128xf32>
    %39 = vector.shape_cast %38 : vector<1x1x128xf32> to vector<1x128xf32>
    %40 = vector.broadcast %39 : vector<1x128xf32> to vector<16x128xf32>
    %41 = arith.addf %37, %40 : vector<16x128xf32>
    %42 = math.tanh %41 : vector<16x128xf32>
    %c2_37 = arith.constant 2 : index
    %c0_38 = arith.constant 0 : index
    %c0_39 = arith.constant 0 : index
    %43 = vector.load %arg4[%c2_37, %c0_38, %c0_39] : memref<3x16x128xf32, #tpu.memory_space<vmem>>, vector<1x16x128xf32>
    %44 = vector.shape_cast %43 : vector<1x16x128xf32> to vector<16x128xf32>
    %45 = vector.shape_cast %42 : vector<16x128xf32> to vector<1x16x128xf32>
    tpu.vector_store %arg4[%c2_37, %c0_38, %c0_39], %45 {strides = array<i32>} : memref<3x16x128xf32, #tpu.memory_space<vmem>>, vector<1x16x128xf32>,
    return
  }
}

</mosaic_0001>

<llo_original>
// kernel: _forward_impl.1
$region0: #{_forward_impl.1}
  #allocation0 [shape = 'u32[]', space=smem, size = 0x4, offset = 0x4, fixed_abs, tag = 'smem constant byte address 0x4 - core index']
  #allocation1 [shape = 'u32[144,128]{1,0:T(1,128)}', space=vmem, size = 0x12000, scoped, tag = 'internal scratch']
  %s0 = inlined_call_operand.vmem [shape: bf16[16,128], index: 0, kind: input, shape index: {}]
  %s1 = inlined_call_operand.vmem [shape: bf16[3,16,16], index: 1, kind: input, shape index: {}]
  %s2 = inlined_call_operand.vmem [shape: bf16[3,128,128], index: 2, kind: input, shape index: {}]
  %s3 = inlined_call_operand.vmem [shape: f32[3,1,128], index: 3, kind: input, shape index: {}]
  %s4 = inlined_call_operand.hbm [shape: f32[3,16,128], index: 4, kind: output, shape index: {}]
  %s5 = sld [smem:[#allocation0]]
  $region26: #{_forward_impl.1} parent=0
    _
  %s7 = ssub.s32 1, %s5
  %s8 = scalar_select 0, %s7, %s5
  $region1: #{_forward_impl.1} parent=0
    #allocation2 [shape = 'u8[24576]{0}', space=vmem, size = 0x6000, scoped, tag = 'output window, operand 0, single buffered']
    #allocation3 [shape = 's32[1]{0}', space=sflag, size = 0x4, scoped, tag = 'scoped memory for _forward_impl.1']
    %9 = vsyncpa [#allocation3], 0
    // Predicated region
    $region2: #{_forward_impl.1} parent=1 // pred_check
      _
    $region3: #{_forward_impl.1} parent=1 // pred_check_branch
      %11 = sbr.rel (0) target = $region5
    $region4: #{_forward_impl.1} parent=1 // pred_region
      _
    $region5: #{_forward_impl.1} parent=1 // pred_fallthru
      _
    // Predicated region
    $region6: #{_forward_impl.1} parent=1 // pred_check
      _
    $region7: #{_forward_impl.1} parent=1 // pred_check_branch
      %13 = sbr.rel (0) target = $region9
    $region8: #{_forward_impl.1} parent=1 // pred_region
      _
    $region9: #{_forward_impl.1} parent=1 // pred_fallthru
      _
    // Predicated region
    $region10: #{_forward_impl.1} parent=1 // pred_check
      _
    $region11: #{_forward_impl.1} parent=1 // pred_check_branch
      %15 = sbr.rel (0) target = $region13
    $region12: #{_forward_impl.1} parent=1 // pred_region
      _
    $region13: #{_forward_impl.1} parent=1 // pred_fallthru
      _
    // Predicated region
    $region14: #{_forward_impl.1} parent=1 // pred_check
      _
    $region15: #{_forward_impl.1} parent=1 // pred_check_branch
      %17 = sbr.rel (0) target = $region17
    $region16: #{_forward_impl.1} parent=1 // pred_region
      _
    $region17: #{_forward_impl.1} parent=1 // pred_fallthru
      _
    %v19 = vld [vmem:[%s0] sm:$0xf]
    %v20 = vld [vmem:[%s0 + $0x4] sm:$0xf]
    %v21 = vld [vmem:[%s1] sm:$0xf]
    %v22 = vld [vmem:[%s1 + $0x4] sm:$0xf]
    %v25 = vunpack.c.l.b16 %v21
    %v26 = vunpack.c.l.b16 %v22
    %v27 = vpack.c.b16 %v26, %v25
    %v30 = vunpack.c.l.b16 %v19
    %v31 = vunpack.c.l.b16 %v20
    %v32 = vpack.c.b16 %v31, %v30
    %vm34 = vcmask 130048
    %v36 = vsel %vm34, %v27, 0
    %38 = vmatprep.subr.bf16.mxu0 0
    %39 = vmatpush1.bf16.msra.mxu0 0
    %40 = vmatprep.subr.bf16.mxu0 0
    %41 = vmatpush1.bf16.msra.mxu0 0
    %42 = vmatprep.subr.bf16.mxu0 0
    %43 = vmatpush1.bf16.msra.mxu0 0
    %44 = vmatprep.subr.bf16.mxu0 0
    %45 = vmatpush1.bf16.msra.mxu0 0
    %46 = vmatprep.subr.bf16.mxu0 0
    %47 = vmatpush1.bf16.msra.mxu0 0
    %48 = vmatprep.subr.bf16.mxu0 0
    %49 = vmatpush1.bf16.msra.mxu0 0
    %50 = vmatprep.subr.bf16.mxu0 0
    %51 = vmatpush1.bf16.msra.mxu0 0
    %52 = vmatprep.subr.bf16.mxu0 0
    %53 = vmatpush1.bf16.msra.mxu0 %v32
    %54 = vmatprep.subr.bf16.mxu0 0
    %55 = vmatpush2.bf16.msra.mxu0 0
    %56 = vmatprep.subr.bf16.mxu0 0
    %57 = vmatpush2.bf16.msra.mxu0 0
    %58 = vmatprep.subr.bf16.mxu0 0
    %59 = vmatpush2.bf16.msra.mxu0 0
    %60 = vmatprep.subr.bf16.mxu0 0
    %61 = vmatpush2.bf16.msra.mxu0 0
    %62 = vmatprep.subr.bf16.mxu0 0
    %63 = vmatpush2.bf16.msra.mxu0 0
    %64 = vmatprep.subr.bf16.mxu0 0
    %65 = vmatpush2.bf16.msra.mxu0 0
    %66 = vmatprep.subr.bf16.mxu0 0
    %67 = vmatpush2.bf16.msra.mxu0 0
    %68 = vmatprep.subr.bf16.mxu0 0
    %69 = vmatpush2.bf16.msra.mxu0 0
    %70 = vmatprep.mubr.bf16.mxu0 0
    %71 = vmatmul.mubr.bf16.gmra.mxu0 %v36
    %v72 = vpop.f32.mrf.mxu0
    %v73 = vadd.f32 0.0, %v72
    %v74 = vpop.f32.mrf.mxu0
    %v75 = vpop.f32.mrf.mxu0
    %v76 = vadd.f32 0.0, %v75
    %v77 = vpop.f32.mrf.mxu0
    %78 = vdwg.mxu0
    %v79 = vpack.c.bf16 %v76, %v73
    %v80 = vld [vmem:[%s2] sm:$0xf]
    %v81 = vld [vmem:[%s2 + $0x4] sm:$0xf]
    %v82 = vld [vmem:[%s2 + $0x8] sm:$0xf]
    %v83 = vld [vmem:[%s2 + $0xc] sm:$0xf]
    %v84 = vld [vmem:[%s2 + $0x10] sm:$0xf]
    %v85 = vld [vmem:[%s2 + $0x14] sm:$0xf]
    %v86 = vld [vmem:[%s2 + $0x18] sm:$0xf]
    %v87 = vld [vmem:[%s2 + $0x1c] sm:$0xf]
    %v88 = vld [vmem:[%s2 + $0x20] sm:$0xf]
    %v89 = vld [vmem:[%s2 + $0x24] sm:$0xf]
    %v90 = vld [vmem:[%s2 + $0x28] sm:$0xf]
    %v91 = vld [vmem:[%s2 + $0x2c] sm:$0xf]
    %v92 = vld [vmem:[%s2 + $0x30] sm:$0xf]
    %v93 = vld [vmem:[%s2 + $0x34] sm:$0xf]
    %v94 = vld [vmem:[%s2 + $0x38] sm:$0xf]
    %v95 = vld [vmem:[%s2 + $0x3c] sm:$0xf]
    %v96 = vld [vmem:[%s3] sm:$0x1]
    %v98 = vlaneseq
    %v99 = vshrl.u32 %v98, 7
    %v100 = vsub.s32 0, %v99
    %v101 = vrot.slane %v96, %v100
    %v119 = vunpack.c.l.b16 %v80
    %v120 = vunpack.c.l.b16 %v81
    %v121 = vunpack.c.l.b16 %v82
    %v122 = vunpack.c.l.b16 %v83
    %v123 = vunpack.c.l.b16 %v84
    %v124 = vunpack.c.l.b16 %v85
    %v125 = vunpack.c.l.b16 %v86
    %v126 = vunpack.c.l.b16 %v87
    %v127 = vunpack.c.l.b16 %v88
    %v128 = vunpack.c.l.b16 %v89
    %v129 = vunpack.c.l.b16 %v90
    %v130 = vunpack.c.l.b16 %v91
    %v131 = vunpack.c.l.b16 %v92
    %v132 = vunpack.c.l.b16 %v93
    %v133 = vunpack.c.l.b16 %v94
    %v134 = vunpack.c.l.b16 %v95
    %v135 = vpack.c.b16 %v120, %v119
    %v136 = vpack.c.b16 %v122, %v121
    %v137 = vpack.c.b16 %v124, %v123
    %v138 = vpack.c.b16 %v126, %v125
    %v139 = vpack.c.b16 %v128, %v127
    %v140 = vpack.c.b16 %v130, %v129
    %v141 = vpack.c.b16 %v132, %v131
    %v142 = vpack.c.b16 %v134, %v133
    %151 = vmatprep.subr.bf16.mxu0 0
    %152 = vmatpush1.bf16.msra.mxu0 %v142
    %153 = vmatprep.subr.bf16.mxu0 0
    %154 = vmatpush1.bf16.msra.mxu0 %v141
    %155 = vmatprep.subr.bf16.mxu0 0
    %156 = vmatpush1.bf16.msra.mxu0 %v140
    %157 = vmatprep.subr.bf16.mxu0 0
    %158 = vmatpush1.bf16.msra.mxu0 %v139
    %159 = vmatprep.subr.bf16.mxu0 0
    %160 = vmatpush1.bf16.msra.mxu0 %v138
    %161 = vmatprep.subr.bf16.mxu0 0
    %162 = vmatpush1.bf16.msra.mxu0 %v137
    %163 = vmatprep.subr.bf16.mxu0 0
    %164 = vmatpush1.bf16.msra.mxu0 %v136
    %165 = vmatprep.subr.bf16.mxu0 0
    %166 = vmatpush1.bf16.msra.mxu0 %v135
    %167 = vmatprep.subr.bf16.mxu0 0
    %168 = vmatpush2.bf16.msra.mxu0 0
    %169 = vmatprep.subr.bf16.mxu0 0
    %170 = vmatpush2.bf16.msra.mxu0 0
    %171 = vmatprep.subr.bf16.mxu0 0
    %172 = vmatpush2.bf16.msra.mxu0 0
    %173 = vmatprep.subr.bf16.mxu0 0
    %174 = vmatpush2.bf16.msra.mxu0 0
    %175 = vmatprep.subr.bf16.mxu0 0
    %176 = vmatpush2.bf16.msra.mxu0 0
    %177 = vmatprep.subr.bf16.mxu0 0
    %178 = vmatpush2.bf16.msra.mxu0 0
    %179 = vmatprep.subr.bf16.mxu0 0
    %180 = vmatpush2.bf16.msra.mxu0 0
    %181 = vmatprep.subr.bf16.mxu0 0
    %182 = vmatpush2.bf16.msra.mxu0 0
    %183 = vmatprep.mubr.bf16.mxu0 0
    %184 = vmatmul.mubr.bf16.gmra.mxu0 %v79
    %v185 = vpop.f32.mrf.mxu0
    %v186 = vadd.f32 %v101, %v185
    %v187 = vpop.f32.mrf.mxu0
    %v188 = vpop.f32.mrf.mxu0
    %v189 = vadd.f32 %v101, %v188
    %v190 = vpop.f32.mrf.mxu0
    %191 = vdwg.mxu0
    %v192 = vtanh.pop %v186
    %v193 = vtanh.pop %v189
    %194 = vst [vmem:[#allocation2] sm:$0xff] %v192
    %195 = vst [vmem:[#allocation2 + $0x8] sm:$0xff] %v193
    %s196 = scalar_lea.vmem %s1, 8
    %v197 = vld [vmem:[%s196] sm:$0xf]
    %v198 = vld [vmem:[%s196 + $0x4] sm:$0xf]
    %v201 = vunpack.c.l.b16 %v197
    %v202 = vunpack.c.l.b16 %v198
    %v203 = vpack.c.b16 %v202, %v201
    %v205 = vsel %vm34, %v203, 0
    %207 = vmatprep.subr.bf16.mxu0 0
    %208 = vmatpush1.bf16.msra.mxu0 0
    %209 = vmatprep.subr.bf16.mxu0 0
    %210 = vmatpush1.bf16.msra.mxu0 0
    %211 = vmatprep.subr.bf16.mxu0 0
    %212 = vmatpush1.bf16.msra.mxu0 0
    %213 = vmatprep.subr.bf16.mxu0 0
    %214 = vmatpush1.bf16.msra.mxu0 0
    %215 = vmatprep.subr.bf16.mxu0 0
    %216 = vmatpush1.bf16.msra.mxu0 0
    %217 = vmatprep.subr.bf16.mxu0 0
    %218 = vmatpush1.bf16.msra.mxu0 0
    %219 = vmatprep.subr.bf16.mxu0 0
    %220 = vmatpush1.bf16.msra.mxu0 0
    %221 = vmatprep.subr.bf16.mxu0 0
    %222 = vmatpush1.bf16.msra.mxu0 %v32
    %223 = vmatprep.subr.bf16.mxu0 0
    %224 = vmatpush2.bf16.msra.mxu0 0
    %225 = vmatprep.subr.bf16.mxu0 0
    %226 = vmatpush2.bf16.msra.mxu0 0
    %227 = vmatprep.subr.bf16.mxu0 0
    %228 = vmatpush2.bf16.msra.mxu0 0
    %229 = vmatprep.subr.bf16.mxu0 0
    %230 = vmatpush2.bf16.msra.mxu0 0
    %231 = vmatprep.subr.bf16.mxu0 0
    %232 = vmatpush2.bf16.msra.mxu0 0
    %233 = vmatprep.subr.bf16.mxu0 0
    %234 = vmatpush2.bf16.msra.mxu0 0
    %235 = vmatprep.subr.bf16.mxu0 0
    %236 = vmatpush2.bf16.msra.mxu0 0
    %237 = vmatprep.subr.bf16.mxu0 0
    %238 = vmatpush2.bf16.msra.mxu0 0
    %239 = vmatprep.mubr.bf16.mxu0 0
    %240 = vmatmul.mubr.bf16.gmra.mxu0 %v205
    %v241 = vpop.f32.mrf.mxu0
    %v242 = vadd.f32 0.0, %v241
    %v243 = vpop.f32.mrf.mxu0
    %v244 = vpop.f32.mrf.mxu0
    %v245 = vadd.f32 0.0, %v244
    %v246 = vpop.f32.mrf.mxu0
    %247 = vdwg.mxu0
    %v248 = vpack.c.bf16 %v245, %v242
    %s249 = scalar_lea.vmem %s2, 64
    %v250 = vld [vmem:[%s249] sm:$0xf]
    %v251 = vld [vmem:[%s249 + $0x4] sm:$0xf]
    %v252 = vld [vmem:[%s249 + $0x8] sm:$0xf]
    %v253 = vld [vmem:[%s249 + $0xc] sm:$0xf]
    %v254 = vld [vmem:[%s249 + $0x10] sm:$0xf]
    %v255 = vld [vmem:[%s249 + $0x14] sm:$0xf]
    %v256 = vld [vmem:[%s249 + $0x18] sm:$0xf]
    %v257 = vld [vmem:[%s249 + $0x1c] sm:$0xf]
    %v258 = vld [vmem:[%s249 + $0x20] sm:$0xf]
    %v259 = vld [vmem:[%s249 + $0x24] sm:$0xf]
    %v260 = vld [vmem:[%s249 + $0x28] sm:$0xf]
    %v261 = vld [vmem:[%s249 + $0x2c] sm:$0xf]
    %v262 = vld [vmem:[%s249 + $0x30] sm:$0xf]
    %v263 = vld [vmem:[%s249 + $0x34] sm:$0xf]
    %v264 = vld [vmem:[%s249 + $0x38] sm:$0xf]
    %v265 = vld [vmem:[%s249 + $0x3c] sm:$0xf]
    %s266 = scalar_lea.vmem %s3, 1
    %v267 = vld [vmem:[%s266] sm:$0x1]
    %v269 = vlaneseq
    %v270 = vshrl.u32 %v269, 7
    %v271 = vsub.s32 0, %v270
    %v272 = vrot.slane %v267, %v271
    %v290 = vunpack.c.l.b16 %v250
    %v291 = vunpack.c.l.b16 %v251
    %v292 = vunpack.c.l.b16 %v252
    %v293 = vunpack.c.l.b16 %v253
    %v294 = vunpack.c.l.b16 %v254
    %v295 = vunpack.c.l.b16 %v255
    %v296 = vunpack.c.l.b16 %v256
    %v297 = vunpack.c.l.b16 %v257
    %v298 = vunpack.c.l.b16 %v258
    %v299 = vunpack.c.l.b16 %v259
    %v300 = vunpack.c.l.b16 %v260
    %v301 = vunpack.c.l.b16 %v261
    %v302 = vunpack.c.l.b16 %v262
    %v303 = vunpack.c.l.b16 %v263
    %v304 = vunpack.c.l.b16 %v264
    %v305 = vunpack.c.l.b16 %v265
    %v306 = vpack.c.b16 %v291, %v290
    %v307 = vpack.c.b16 %v293, %v292
    %v308 = vpack.c.b16 %v295, %v294
    %v309 = vpack.c.b16 %v297, %v296
    %v310 = vpack.c.b16 %v299, %v298
    %v311 = vpack.c.b16 %v301, %v300
    %v312 = vpack.c.b16 %v303, %v302
    %v313 = vpack.c.b16 %v305, %v304
    %322 = vmatprep.subr.bf16.mxu0 0
    %323 = vmatpush1.bf16.msra.mxu0 %v313
    %324 = vmatprep.subr.bf16.mxu0 0
    %325 = vmatpush1.bf16.msra.mxu0 %v312
    %326 = vmatprep.subr.bf16.mxu0 0
    %327 = vmatpush1.bf16.msra.mxu0 %v311
    %328 = vmatprep.subr.bf16.mxu0 0
    %329 = vmatpush1.bf16.msra.mxu0 %v310
    %330 = vmatprep.subr.bf16.mxu0 0
    %331 = vmatpush1.bf16.msra.mxu0 %v309
    %332 = vmatprep.subr.bf16.mxu0 0
    %333 = vmatpush1.bf16.msra.mxu0 %v308
    %334 = vmatprep.subr.bf16.mxu0 0
    %335 = vmatpush1.bf16.msra.mxu0 %v307
    %336 = vmatprep.subr.bf16.mxu0 0
    %337 = vmatpush1.bf16.msra.mxu0 %v306
    %338 = vmatprep.subr.bf16.mxu0 0
    %339 = vmatpush2.bf16.msra.mxu0 0
    %340 = vmatprep.subr.bf16.mxu0 0
    %341 = vmatpush2.bf16.msra.mxu0 0
    %342 = vmatprep.subr.bf16.mxu0 0
    %343 = vmatpush2.bf16.msra.mxu0 0
    %344 = vmatprep.subr.bf16.mxu0 0
    %345 = vmatpush2.bf16.msra.mxu0 0
    %346 = vmatprep.subr.bf16.mxu0 0
    %347 = vmatpush2.bf16.msra.mxu0 0
    %348 = vmatprep.subr.bf16.mxu0 0
    %349 = vmatpush2.bf16.msra.mxu0 0
    %350 = vmatprep.subr.bf16.mxu0 0
    %351 = vmatpush2.bf16.msra.mxu0 0
    %352 = vmatprep.subr.bf16.mxu0 0
    %353 = vmatpush2.bf16.msra.mxu0 0
    %354 = vmatprep.mubr.bf16.mxu0 0
    %355 = vmatmul.mubr.bf16.gmra.mxu0 %v248
    %v356 = vpop.f32.mrf.mxu0
    %v357 = vadd.f32 %v272, %v356
    %v358 = vpop.f32.mrf.mxu0
    %v359 = vpop.f32.mrf.mxu0
    %v360 = vadd.f32 %v272, %v359
    %v361 = vpop.f32.mrf.mxu0
    %362 = vdwg.mxu0
    %v363 = vtanh.pop %v357
    %v364 = vtanh.pop %v360
    %s365 = scalar_lea.vmem [#allocation2], 16
    %366 = vst [vmem:[%s365] sm:$0xff] %v363
    %367 = vst [vmem:[%s365 + $0x8] sm:$0xff] %v364
    %s368 = scalar_lea.vmem %s1, 16
    %v369 = vld [vmem:[%s368] sm:$0xf]
    %v370 = vld [vmem:[%s368 + $0x4] sm:$0xf]
    %v373 = vunpack.c.l.b16 %v369
    %v374 = vunpack.c.l.b16 %v370
    %v375 = vpack.c.b16 %v374, %v373
    %v377 = vsel %vm34, %v375, 0
    %379 = vmatprep.subr.bf16.mxu0 0
    %380 = vmatpush1.bf16.msra.mxu0 0
    %381 = vmatprep.subr.bf16.mxu0 0
    %382 = vmatpush1.bf16.msra.mxu0 0
    %383 = vmatprep.subr.bf16.mxu0 0
    %384 = vmatpush1.bf16.msra.mxu0 0
    %385 = vmatprep.subr.bf16.mxu0 0
    %386 = vmatpush1.bf16.msra.mxu0 0
    %387 = vmatprep.subr.bf16.mxu0 0
    %388 = vmatpush1.bf16.msra.mxu0 0
    %389 = vmatprep.subr.bf16.mxu0 0
    %390 = vmatpush1.bf16.msra.mxu0 0
    %391 = vmatprep.subr.bf16.mxu0 0
    %392 = vmatpush1.bf16.msra.mxu0 0
    %393 = vmatprep.subr.bf16.mxu0 0
    %394 = vmatpush1.bf16.msra.mxu0 %v32
    %395 = vmatprep.subr.bf16.mxu0 0
    %396 = vmatpush2.bf16.msra.mxu0 0
    %397 = vmatprep.subr.bf16.mxu0 0
    %398 = vmatpush2.bf16.msra.mxu0 0
    %399 = vmatprep.subr.bf16.mxu0 0
    %400 = vmatpush2.bf16.msra.mxu0 0
    %401 = vmatprep.subr.bf16.mxu0 0
    %402 = vmatpush2.bf16.msra.mxu0 0
    %403 = vmatprep.subr.bf16.mxu0 0
    %404 = vmatpush2.bf16.msra.mxu0 0
    %405 = vmatprep.subr.bf16.mxu0 0
    %406 = vmatpush2.bf16.msra.mxu0 0
    %407 = vmatprep.subr.bf16.mxu0 0
    %408 = vmatpush2.bf16.msra.mxu0 0
    %409 = vmatprep.subr.bf16.mxu0 0
    %410 = vmatpush2.bf16.msra.mxu0 0
    %411 = vmatprep.mubr.bf16.mxu0 0
    %412 = vmatmul.mubr.bf16.gmra.mxu0 %v377
    %v413 = vpop.f32.mrf.mxu0
    %v414 = vadd.f32 0.0, %v413
    %v415 = vpop.f32.mrf.mxu0
    %v416 = vpop.f32.mrf.mxu0
    %v417 = vadd.f32 0.0, %v416
    %v418 = vpop.f32.mrf.mxu0
    %419 = vdwg.mxu0
    %v420 = vpack.c.bf16 %v417, %v414
    %s421 = scalar_lea.vmem %s2, 128
    %v422 = vld [vmem:[%s421] sm:$0xf]
    %v423 = vld [vmem:[%s421 + $0x4] sm:$0xf]
    %v424 = vld [vmem:[%s421 + $0x8] sm:$0xf]
    %v425 = vld [vmem:[%s421 + $0xc] sm:$0xf]
    %v426 = vld [vmem:[%s421 + $0x10] sm:$0xf]
    %v427 = vld [vmem:[%s421 + $0x14] sm:$0xf]
    %v428 = vld [vmem:[%s421 + $0x18] sm:$0xf]
    %v429 = vld [vmem:[%s421 + $0x1c] sm:$0xf]
    %v430 = vld [vmem:[%s421 + $0x20] sm:$0xf]
    %v431 = vld [vmem:[%s421 + $0x24] sm:$0xf]
    %v432 = vld [vmem:[%s421 + $0x28] sm:$0xf]
    %v433 = vld [vmem:[%s421 + $0x2c] sm:$0xf]
    %v434 = vld [vmem:[%s421 + $0x30] sm:$0xf]
    %v435 = vld [vmem:[%s421 + $0x34] sm:$0xf]
    %v436 = vld [vmem:[%s421 + $0x38] sm:$0xf]
    %v437 = vld [vmem:[%s421 + $0x3c] sm:$0xf]
    %s438 = scalar_lea.vmem %s3, 2
    %v439 = vld [vmem:[%s438] sm:$0x1]
    %v441 = vlaneseq
    %v442 = vshrl.u32 %v441, 7
    %v443 = vsub.s32 0, %v442
    %v444 = vrot.slane %v439, %v443
    %v462 = vunpack.c.l.b16 %v422
    %v463 = vunpack.c.l.b16 %v423
    %v464 = vunpack.c.l.b16 %v424
    %v465 = vunpack.c.l.b16 %v425
    %v466 = vunpack.c.l.b16 %v426
    %v467 = vunpack.c.l.b16 %v427
    %v468 = vunpack.c.l.b16 %v428
    %v469 = vunpack.c.l.b16 %v429
    %v470 = vunpack.c.l.b16 %v430
    %v471 = vunpack.c.l.b16 %v431
    %v472 = vunpack.c.l.b16 %v432
    %v473 = vunpack.c.l.b16 %v433
    %v474 = vunpack.c.l.b16 %v434
    %v475 = vunpack.c.l.b16 %v435
    %v476 = vunpack.c.l.b16 %v436
    %v477 = vunpack.c.l.b16 %v437
    %v478 = vpack.c.b16 %v463, %v462
    %v479 = vpack.c.b16 %v465, %v464
    %v480 = vpack.c.b16 %v467, %v466
    %v481 = vpack.c.b16 %v469, %v468
    %v482 = vpack.c.b16 %v471, %v470
    %v483 = vpack.c.b16 %v473, %v472
    %v484 = vpack.c.b16 %v475, %v474
    %v485 = vpack.c.b16 %v477, %v476
    %494 = vmatprep.subr.bf16.mxu0 0
    %495 = vmatpush1.bf16.msra.mxu0 %v485
    %496 = vmatprep.subr.bf16.mxu0 0
    %497 = vmatpush1.bf16.msra.mxu0 %v484
    %498 = vmatprep.subr.bf16.mxu0 0
    %499 = vmatpush1.bf16.msra.mxu0 %v483
    %500 = vmatprep.subr.bf16.mxu0 0
    %501 = vmatpush1.bf16.msra.mxu0 %v482
    %502 = vmatprep.subr.bf16.mxu0 0
    %503 = vmatpush1.bf16.msra.mxu0 %v481
    %504 = vmatprep.subr.bf16.mxu0 0
    %505 = vmatpush1.bf16.msra.mxu0 %v480
    %506 = vmatprep.subr.bf16.mxu0 0
    %507 = vmatpush1.bf16.msra.mxu0 %v479
    %508 = vmatprep.subr.bf16.mxu0 0
    %509 = vmatpush1.bf16.msra.mxu0 %v478
    %510 = vmatprep.subr.bf16.mxu0 0
    %511 = vmatpush2.bf16.msra.mxu0 0
    %512 = vmatprep.subr.bf16.mxu0 0
    %513 = vmatpush2.bf16.msra.mxu0 0
    %514 = vmatprep.subr.bf16.mxu0 0
    %515 = vmatpush2.bf16.msra.mxu0 0
    %516 = vmatprep.subr.bf16.mxu0 0
    %517 = vmatpush2.bf16.msra.mxu0 0
    %518 = vmatprep.subr.bf16.mxu0 0
    %519 = vmatpush2.bf16.msra.mxu0 0
    %520 = vmatprep.subr.bf16.mxu0 0
    %521 = vmatpush2.bf16.msra.mxu0 0
    %522 = vmatprep.subr.bf16.mxu0 0
    %523 = vmatpush2.bf16.msra.mxu0 0
    %524 = vmatprep.subr.bf16.mxu0 0
    %525 = vmatpush2.bf16.msra.mxu0 0
    %526 = vmatprep.mubr.bf16.mxu0 0
    %527 = vmatmul.mubr.bf16.gmra.mxu0 %v420
    %v528 = vpop.f32.mrf.mxu0
    %v529 = vadd.f32 %v444, %v528
    %v530 = vpop.f32.mrf.mxu0
    %v531 = vpop.f32.mrf.mxu0
    %v532 = vadd.f32 %v444, %v531
    %v533 = vpop.f32.mrf.mxu0
    %534 = vdwg.mxu0
    %v535 = vtanh.pop %v529
    %v536 = vtanh.pop %v532
    %s537 = scalar_lea.vmem [#allocation2], 32
    %538 = vst [vmem:[%s537] sm:$0xff] %v535
    %539 = vst [vmem:[%s537 + $0x8] sm:$0xff] %v536
    // Predicated region
    $region18: #{_forward_impl.1} parent=1 // pred_check
      _
    $region19: #{_forward_impl.1} parent=1 // pred_check_branch
      %541 = sbr.rel (0) target = $region21
    $region20: #{_forward_impl.1} parent=1 // pred_region
      %s543 = ssub.s32 768, 768
      %544 = vsyncadd [#allocation3], %s543
      %s545 = sshll.u32 [#allocation2], 4
      %s546 = int_to_ptr.vmem [resolvable:$true] %s545
      %551 = dma.vmem_to_hbm [thread:$0]  %s546, 768, %s4, [#allocation3], 128, 128, 8
    $region21: #{_forward_impl.1} parent=1 // pred_fallthru
      _
    // Predicated region
    $region22: #{_forward_impl.1} parent=1 // pred_check
      _
    $region23: #{_forward_impl.1} parent=1 // pred_check_branch
      %553 = sbr.rel (0) target = $region25
    $region24: #{_forward_impl.1} parent=1 // pred_region
      %554 = dma.done [#allocation3], 768
    $region25: #{_forward_impl.1} parent=1 // pred_fallthru
      _
    %555 = vsyncpa [#allocation3], 1

</llo_original>
